<compile_context>
chip_gen: v7x
topology: tpu7x:2x2x1
jax: 0.10.0
libtpu: 0.0.40
codegen_flags: <defaults>
</compile_context>

<pallas_src>
import functools
import math

import jax
import jax.numpy as jnp
from jax.experimental import pallas as pl
from jax.experimental.pallas import tpu as pltpu

_LANE = 128
_MAX_COLS = 4096


def _tile_budget_bytes():
    """Per-buffer tile budget, generation-aware.

    v5e/v6e are already past the ~85% HBM-roofline knee at 4 MiB tiles; v7x's
    3.2 TB/s HBM makes the fixed ~0.35us/step overhead relatively larger, so
    use bigger tiles there (still well inside its 64 MiB per-TC VMEM with
    in+out double-buffered).
    """
    try:
        kind = jax.devices()[0].device_kind.lower()
    except Exception:  # pragma: no cover - defensive
        kind = ""
    if "7" in kind:
        return 8 << 20
    return 4 << 20


def _sublane_pack(itemsize):
    """Rows per sublane group: 8 for f32, 16 for bf16, 32 for int8/fp8."""
    return 8 * max(1, 4 // itemsize)


def _choose_layout(n, itemsize):
    """Lane-dense 2-D (rows, cols) layout for n padded elements.

    Pads n up to a multiple of sublane*128 so:
      * every vector store is unmasked (cols is a multiple of 128),
      * rows is a multiple of the dtype's sublane packing (full vregs).
    Returns (n_pad, rows, cols, block_rows).
    """
    sublane = _sublane_pack(itemsize)
    pad_unit = sublane * _LANE
    n_pad = ((n + pad_unit - 1) // pad_unit) * pad_unit

    # Largest power-of-two lane width (<= 4096) that keeps rows a multiple of
    # the sublane packing.  cols = 128 always qualifies because
    # n_pad % (128 * sublane) == 0 by construction.
    cols = _LANE
    c = _LANE * 2
    while c <= _MAX_COLS and n_pad % (c * sublane) == 0:
        cols = c
        c *= 2
    rows = n_pad // cols

    # Row tile from the per-buffer VMEM budget, rounded to the sublane packing.
    max_rows = max(sublane, _tile_budget_bytes() // (cols * itemsize))
    if rows <= max_rows:
        block_rows = rows
    else:
        block_rows = max(sublane, (max_rows // sublane) * sublane)
    return n_pad, rows, cols, block_rows


@functools.lru_cache(maxsize=128)
def _build_elementwise_call(shape, dtype, transform):
    """Build (once per key) a jitted, Pallas-backed elementwise transform."""
    dtype = jnp.dtype(dtype)
    itemsize = dtype.itemsize
    n = math.prod(shape)
    n_pad, rows, cols, block_rows = _choose_layout(n, itemsize)
    pad = n_pad - n

    def kernel(x_ref, o_ref):
        o_ref[...] = transform(x_ref[...]).astype(o_ref.dtype)

    block_bytes = block_rows * cols * itemsize
    # in + out, double-buffered, plus slack; clamp to a sane range.
    vmem_limit = min(max(4 * block_bytes + (4 << 20), 32 << 20), 48 << 20)

    call = pl.pallas_call(
        kernel,
        out_shape=jax.ShapeDtypeStruct((rows, cols), dtype),
        grid=(pl.cdiv(rows, block_rows),),
        in_specs=[pl.BlockSpec((block_rows, cols), lambda i: (i, 0))],
        out_specs=pl.BlockSpec((block_rows, cols), lambda i: (i, 0)),
        compiler_params=pltpu.CompilerParams(
            # TODO(synk): "parallel" vs "arbitrary" has near-zero codegen
            # impact; true dual-TC sharding on v7x would need CORE_PARALLEL /
            # core_map (single-TC already near HBM roofline for this kernel).
            dimension_semantics=("parallel",),
            vmem_limit_bytes=vmem_limit,
        ),
        cost_estimate=pl.CostEstimate(
            flops=n_pad,
            transcendentals=0,
            bytes_accessed=2 * n_pad * itemsize,
        ),
    )

    def run(x):
        flat = x.reshape(-1)
        if pad:
            flat = jnp.pad(flat, (0, pad))
        out = call(flat.reshape(rows, cols)).reshape(-1)
        if pad:
            out = out[:n]
        return out.reshape(shape)

    return jax.jit(run)


def _elementwise_pallas(attn_weights, transform):
    """Apply an elementwise `transform` to attn_weights via a cached kernel."""
    fn = _build_elementwise_call(
        tuple(attn_weights.shape), jnp.dtype(attn_weights.dtype), transform
    )
    return fn(attn_weights)


class AttentionAdapterBase:
    """JAX/Pallas port of the PyTorch AttentionAdapterBase."""

    def __init__(self, *args, **kwargs):
        self.use_flag = True
        self.input_ids = None

    def __call__(self, attn_weights):
        return self.forward(attn_weights)

    def forward(self, attn_weights):
        if self.use_flag:
            return self._forward(attn_weights)
        else:
            # Identity path: no kernel launch, no HBM traffic.
            return attn_weights

    def _forward(self, attn_weights):
        # Matches the PyTorch base class: abstract hook.
        raise NotImplementedError

    def register_input_ids(self, input_ids):
        self.input_ids = input_ids


class PallasElementwiseAdapter(AttentionAdapterBase):
    """Subclass hook implemented with the lane-dense Pallas elementwise kernel.

    TODO(synk): for a pure elementwise reweighting, fusing the transform into
    the producing attention computation (e.g. the flash-attention score path)
    eliminates the 2N-byte HBM round trip entirely; this standalone kernel is
    the fallback when the attention op cannot be modified.
    """

    def __init__(self, transform=None):
        super().__init__()
        self._transform = transform  # stable identity -> stable cache key

    def _forward(self, attn_weights):
        if self._transform is None:
            return attn_weights  # identity: skip the kernel entirely
        return _elementwise_pallas(attn_weights, self._transform)


if __name__ == "__main__":
    key = jax.random.PRNGKey(0)
    k1, k2 = jax.random.split(key)

    # attn_weights: [batch=2, heads=4, q_len=8, k_len=8]  (512 elems -> padded)
    logits_small = jax.random.normal(k1, (2, 4, 8, 8), dtype=jnp.float32)
    attn_small = jax.nn.softmax(logits_small, axis=-1)
    # attn_weights: [batch=2, heads=4, q_len=8, k_len=128] (lane-dense, no pad)
    logits_big = jax.random.normal(k2, (2, 4, 8, 128), dtype=jnp.float32)
    attn_big = jax.nn.softmax(logits_big, axis=-1)

    input_ids = jnp.arange(2 * 8, dtype=jnp.int32).reshape(2, 8)

    # 1) Base-class semantics: use_flag=False is identity (no kernel);
    #    use_flag=True hits the abstract hook.
    base = AttentionAdapterBase()
    base.register_input_ids(input_ids)
    base.use_flag = False
    out_id = jax.block_until_ready(base(attn_small))
    assert out_id.shape == attn_small.shape and out_id.dtype == attn_small.dtype
    assert bool(jnp.allclose(out_id, attn_small))
    base.use_flag = True
    try:
        base(attn_small)
        raise AssertionError("base _forward should be abstract")
    except NotImplementedError:
        pass

    # 2) Pallas-backed subclass hook: elementwise reweighting (x * 2).
    scale = 2.0
    transform = lambda w: w * scale  # noqa: E731  (stable identity for cache)
    adapter = PallasElementwiseAdapter(transform)
    adapter.register_input_ids(input_ids)

    # Padded path (512 elems, f32).
    out_small = jax.block_until_ready(adapter(attn_small))
    assert out_small.shape == attn_small.shape and out_small.dtype == attn_small.dtype
    assert bool(jnp.allclose(out_small, attn_small * scale, rtol=1e-6, atol=1e-6))

    # Second call with the same (shape, dtype, transform) hits the cached jit.
    out_small2 = jax.block_until_ready(adapter(attn_small))
    assert bool(jnp.allclose(out_small2, out_small))

    # Unpadded lane-dense path (8192 elems, f32).
    out_big = jax.block_until_ready(adapter(attn_big))
    assert out_big.shape == attn_big.shape and out_big.dtype == attn_big.dtype
    assert bool(jnp.allclose(out_big, attn_big * scale, rtol=1e-6, atol=1e-6))

    # bf16 path: exercises the sublane-packing-aware layout and the
    # .astype(o_ref.dtype) cast in the kernel (scale=2 is exact in bf16).
    attn_bf16 = attn_small.astype(jnp.bfloat16)
    out_bf16 = jax.block_until_ready(adapter(attn_bf16))
    assert out_bf16.shape == attn_bf16.shape and out_bf16.dtype == jnp.bfloat16
    assert bool(jnp.allclose(out_bf16.astype(jnp.float32),
                             (attn_bf16 * scale).astype(jnp.float32),
                             rtol=1e-2, atol=1e-2))

    print("KERNEL_OK")
</pallas_src>

<mosaic_0001>
module attributes {stable_mosaic.version = 11 : i64} {
  func.func @kernel(%arg0: i32, %arg1: memref<8x128xf32, #tpu.memory_space<vmem>>, %arg2: memref<8x128xf32, #tpu.memory_space<vmem>>) attributes {dimension_semantics = [#tpu.dimension_semantics<parallel>], iteration_bounds = array<i64: 1>, scalar_prefetch = 0 : i64, scratch_operands = 0 : i64, tpu.core_type = #tpu.core_type<tc>, window_params = [{transform_indices = @transform_0, window_bounds = array<i64: 8, 128>}, {transform_indices = @transform_1, window_bounds = array<i64: 8, 128>}]} {
    %c0 = arith.constant 0 : index
    %c0_0 = arith.constant 0 : index
    %0 = vector.load %arg1[%c0, %c0_0] : memref<8x128xf32, #tpu.memory_space<vmem>>, vector<8x128xf32>
    %cst = arith.constant 2.000000e+00 : f32
    %1 = vector.broadcast %cst : f32 to vector<8x128xf32>
    %2 = arith.mulf %0, %1 : vector<8x128xf32>
    %c0_1 = arith.constant 0 : index
    %c0_2 = arith.constant 0 : index
    %3 = vector.load %arg2[%c0_1, %c0_2] : memref<8x128xf32, #tpu.memory_space<vmem>>, vector<8x128xf32>
    tpu.vector_store %arg2[%c0_1, %c0_2], %2 {strides = array<i32>} : memref<8x128xf32, #tpu.memory_space<vmem>>, vector<8x128xf32>,
    return
  }
  func.func @transform_0(%arg0: i32) -> (i32, i32) {
    %c0_i32 = arith.constant 0 : i32
    %c0_i32_0 = arith.constant 0 : i32
    return %arg0, %c0_i32 : i32, i32
  }
  func.func @transform_1(%arg0: i32) -> (i32, i32) {
    %c0_i32 = arith.constant 0 : i32
    %c0_i32_0 = arith.constant 0 : i32
    return %arg0, %c0_i32 : i32, i32
  }
}

</mosaic_0001>

<llo_original>
// kernel: run.1
$region0: #{run.1}
  #allocation0 [shape = 'u32[]', space=smem, size = 0x4, offset = 0x4, fixed_abs, tag = 'smem constant byte address 0x4 - core index']
  #allocation1 [shape = 'u32[144,128]{1,0:T(1,128)}', space=vmem, size = 0x12000, scoped, tag = 'internal scratch']
  %s0 = inlined_call_operand.vmem [shape: f32[8,128], index: 0, kind: input, shape index: {}]
  %s1 = inlined_call_operand.vmem [shape: f32[8,128], index: 1, kind: output, shape index: {}]
  %s2 = sld [smem:[#allocation0]]
  $region14: #{run.1} parent=0
    _
  %s4 = ssub.s32 1, %s2
  %s5 = scalar_select 0, %s4, %s2
  // Predicated region
  $region2: #{run.1} parent=0 // pred_check
    _
  $region3: #{run.1} parent=0 // pred_check_branch
    %7 = sbr.rel (0) target = $region5
  $region4: #{run.1} parent=0 // pred_region
    _
  $region5: #{run.1} parent=0 // pred_fallthru
    _
  %v8 = vld [vmem:[%s0] sm:$0xff]
  %v9 = vmul.f32 %v8, 2.0
  %10 = vst [vmem:[%s1] sm:$0xff] %v9
  // Predicated region
  $region6: #{run.1} parent=0 // pred_check
    _
  $region7: #{run.1} parent=0 // pred_check_branch
    %12 = sbr.rel (0) target = $region9
  $region8: #{run.1} parent=0 // pred_region
    _
  $region9: #{run.1} parent=0 // pred_fallthru
    _
  // Predicated region
  $region10: #{run.1} parent=0 // pred_check
    _
  $region11: #{run.1} parent=0 // pred_check_branch
    %14 = sbr.rel (0) target = $region13
  $region12: #{run.1} parent=0 // pred_region
    _
  $region13: #{run.1} parent=0 // pred_fallthru
    _

</llo_original>
